<compile_context>
chip_gen: v5e
topology: v5e:2x2
jax: 0.10.0
libtpu: 0.0.40
codegen_flags: <defaults>
</compile_context>

<pallas_src>
import functools

import jax
import jax.numpy as jnp
import numpy as np
from jax import lax
from jax.experimental import pallas as pl
from jax.experimental.pallas import tpu as pltpu


_SG = 8  # sublane group size: one f32 (8, 128)-tiled accumulator row group


def _round_up(x, m):
    return ((x + m - 1) // m) * m


def _sam2_partial_kernel(pred_ref, gt_ref, acc_ref, *, hc, threshold, unroll):
    """Accumulate per-(batch, split) partial sums across the row-chunk grid axis.

    acc_ref layout, shape (3*_SG, W) f32:
      rows [0:8)    partial sum of BCE-with-logits
      rows [8:16)   partial sum of gt * (pred > thr)          (intersection)
      rows [16:24)  partial sum of gt + (pred > thr)          (y_sum + pred_sum)
    """
    r = pl.program_id(2)

    @pl.when(r == 0)
    def _():
        acc_ref[...] = jnp.zeros_like(acc_ref)

    thr = jnp.float32(threshold)
    n_steps = hc // _SG

    def body(i, carry):
        off = pl.multiple_of(i * _SG, _SG)
        x = pred_ref[pl.ds(off, _SG), :].astype(jnp.float32)   # logits
        y = gt_ref[pl.ds(off, _SG), :].astype(jnp.float32)     # targets in [0, 1]

        # Numerically stable BCE-with-logits: max(x,0) - x*y + log1p(exp(-|x|)).
        # TODO(synk): on v6e/v7x this chain could run in bf16 (2x VALU/EUP
        # throughput) with f32 accumulation; kept f32 for exact reference parity.
        bce = jnp.maximum(x, 0.0) - x * y + jnp.log1p(jnp.exp(-jnp.abs(x)))

        mask = x > thr
        binf = mask.astype(jnp.float32)
        inter = jnp.where(mask, y, 0.0)

        # Sublane-aligned RMW into the resident accumulator block (pure VPU adds,
        # no XLU reductions, bounded vreg live range per 8-row group).
        acc_ref[0:_SG, :] += bce
        acc_ref[_SG:2 * _SG, :] += inter
        acc_ref[2 * _SG:3 * _SG, :] += y + binf
        return carry

    lax.fori_loop(0, n_steps, body, 0, unroll=unroll)


def custom_sam2_loss(best_pred, gt_mask, pred_iou, threshold, score_weight=0.05):
    """JAX/Pallas equivalent of Custom_SAM2_Loss.forward.

    Returns (total_loss, {'seg': device scalar, 'score': device scalar}).
    Components stay on device (no blocking host transfer); the caller decides
    when to sync.
    """
    best_pred = jnp.asarray(best_pred)
    gt_mask = jnp.asarray(gt_mask)
    pred_iou = jnp.asarray(pred_iou, jnp.float32)

    if best_pred.ndim == 2:
        best_pred = best_pred[None]
        gt_mask = gt_mask[None]

    B, H, W = best_pred.shape
    pred_iou = pred_iou.reshape(B)   # one predicted IoU per batch element
    threshold = float(threshold)

    itemsize = max(best_pred.dtype.itemsize, gt_mask.dtype.itemsize)

    # ---- tiling --------------------------------------------------------------
    # ~4 MiB per input block: large enough to amortize per-grid-step overhead on
    # v7x's 3.2 TB/s HBM; 2 inputs x 2 pipeline buffers stay well under the
    # explicit 48 MiB scoped-VMEM limit on every generation.
    target_bytes = 4 << 20
    max_rows = max(_SG, (target_bytes // max(1, W * itemsize)) // _SG * _SG)

    # Extra *parallel* row-split when B is odd so both v7x TensorCores get work
    # (harmless on single-TC v5e/v6e).
    n_split = 2 if (B % 2 == 1) else 1

    target_rows = _round_up(H, _SG)
    if n_split == 2:
        hc = min(max_rows, _round_up(pl.cdiv(target_rows, 2), _SG))
    else:
        hc = min(max_rows, target_rows)
    num_chunks = pl.cdiv(target_rows, hc)
    if num_chunks % n_split:
        num_chunks += 1          # one extra all-zero-contribution chunk
    num_r = num_chunks // n_split
    H_pad = num_chunks * hc

    if H_pad != H:
        # Padded rows contribute exactly zero to every partial sum:
        #   pred = large negative  -> BCE term 0 and fails the (> threshold) test
        #   gt   = 0               -> y / intersection terms 0
        pad_val = min(-1e9, threshold - 1.0)
        best_pred = jnp.pad(best_pred, ((0, 0), (0, H_pad - H), (0, 0)),
                            constant_values=pad_val)
        gt_mask = jnp.pad(gt_mask, ((0, 0), (0, H_pad - H), (0, 0)),
                          constant_values=0)

    n_steps = hc // _SG
    unroll = 4 if n_steps % 4 == 0 else (2 if n_steps % 2 == 0 else 1)

    kernel = functools.partial(
        _sam2_partial_kernel, hc=hc, threshold=threshold, unroll=unroll
    )

    in_map = lambda b, s, r: (b, s * num_r + r, 0)
    out_map = lambda b, s, r: (b, s, 0, 0)

    grid_spec = pltpu.PrefetchScalarGridSpec(
        num_scalar_prefetch=0,
        grid=(B, n_split, num_r),
        in_specs=[
            pl.BlockSpec((None, hc, W), in_map),   # best_pred (native dtype)
            pl.BlockSpec((None, hc, W), in_map),   # gt_mask   (native dtype)
        ],
        out_specs=pl.BlockSpec((None, None, 3 * _SG, W), out_map),
    )

    acc = pl.pallas_call(
        kernel,
        grid_spec=grid_spec,
        out_shape=jax.ShapeDtypeStruct((B, n_split, 3 * _SG, W), jnp.float32),
        compiler_params=pltpu.CompilerParams(
            dimension_semantics=("parallel", "parallel", "arbitrary"),
            vmem_limit_bytes=48 << 20,
        ),
    )(best_pred, gt_mask)

    # Tiny epilogue in plain JAX: cross-lane reductions, IoU, means, weighted sum.
    bce_sum = jnp.sum(acc[:, :, 0:_SG, :], axis=(1, 2, 3))          # (B,)
    inter = jnp.sum(acc[:, :, _SG:2 * _SG, :], axis=(1, 2, 3))      # (B,)
    usum = jnp.sum(acc[:, :, 2 * _SG:3 * _SG, :], axis=(1, 2, 3))   # (B,) y_sum+pred_sum

    seg = jnp.sum(bce_sum) / jnp.float32(B * H * W)                  # mean over real elems
    union = usum - inter
    iou = inter / (union + 1e-6)
    score = jnp.mean(jnp.abs(pred_iou - iou))
    total = seg + jnp.float32(score_weight) * score
    return total, {"seg": seg, "score": score}


def _reference_loss(best_pred, gt_mask, pred_iou, threshold, score_weight=0.05):
    # Pure-JAX reference mirroring the PyTorch module.
    x = jnp.asarray(best_pred, jnp.float32)
    y = jnp.asarray(gt_mask, jnp.float32)
    bce = jnp.maximum(x, 0.0) - x * y + jnp.log1p(jnp.exp(-jnp.abs(x)))
    seg = jnp.mean(bce)
    binary = jnp.where(x > threshold, 1.0, 0.0)
    yt = y.reshape(y.shape[0], -1)
    yp = binary.reshape(binary.shape[0], -1)
    inter = jnp.sum(yt * yp, axis=1)
    union = jnp.sum(yt, axis=1) + jnp.sum(yp, axis=1) - inter
    iou = inter / (union + 1e-6)
    score = jnp.mean(jnp.abs(jnp.asarray(pred_iou, jnp.float32).reshape(-1) - iou))
    return seg + score_weight * score, seg, score


if __name__ == "__main__":
    key = jax.random.PRNGKey(0)
    k1, k2, k3, k4, k5, k6 = jax.random.split(key, 6)

    # Case 1: f32, even batch, 8-aligned H -- exact parity with the reference.
    B, H, W = 2, 16, 128
    best_pred = jax.random.normal(k1, (B, H, W), jnp.float32) * 3.0   # logits
    gt_mask = (jax.random.uniform(k2, (B, H, W)) > 0.5).astype(jnp.float32)
    pred_iou = jax.random.uniform(k3, (B,), jnp.float32)
    threshold = 0.0

    total, parts = custom_sam2_loss(best_pred, gt_mask, pred_iou, threshold)
    total = jax.block_until_ready(total)
    ref_total, ref_seg, ref_score = _reference_loss(best_pred, gt_mask, pred_iou, threshold)
    np.testing.assert_allclose(np.asarray(total), np.asarray(ref_total), rtol=1e-5, atol=1e-5)
    np.testing.assert_allclose(np.asarray(parts["seg"]), np.asarray(ref_seg), rtol=1e-5, atol=1e-5)
    np.testing.assert_allclose(np.asarray(parts["score"]), np.asarray(ref_score), rtol=1e-5, atol=1e-5)

    # Case 2: odd batch (exercises the v7x two-core row split), non-multiple-of-8 H
    # (exercises zero-contribution padding), narrow dtypes (bf16 logits + uint8 mask).
    B2, H2, W2 = 1, 20, 256
    bp2 = (jax.random.normal(k4, (B2, H2, W2), jnp.float32) * 3.0).astype(jnp.bfloat16)
    gm2 = (jax.random.uniform(k5, (B2, H2, W2)) > 0.5).astype(jnp.uint8)
    piou2 = jax.random.uniform(k6, (B2,), jnp.float32)
    thr2 = 0.25

    total2, _ = custom_sam2_loss(bp2, gm2, piou2, thr2)
    total2 = jax.block_until_ready(total2)
    ref2_total, _, _ = _reference_loss(
        bp2.astype(jnp.float32), gm2.astype(jnp.float32), piou2, thr2
    )
    np.testing.assert_allclose(np.asarray(total2), np.asarray(ref2_total), rtol=1e-5, atol=1e-5)

    print("KERNEL_OK")
</pallas_src>

<mosaic_0001>
module attributes {stable_mosaic.version = 11 : i64} {
  func.func @_sam2_partial_kernel(%arg0: i32, %arg1: i32, %arg2: i32, %arg3: memref<1x16x128xf32, #tpu.memory_space<vmem>>, %arg4: memref<1x16x128xf32, #tpu.memory_space<vmem>>, %arg5: memref<1x1x24x128xf32, #tpu.memory_space<vmem>>) attributes {dimension_semantics = [#tpu.dimension_semantics<parallel>, #tpu.dimension_semantics<parallel>, #tpu.dimension_semantics<arbitrary>], iteration_bounds = array<i64: 2, 1, 1>, scalar_prefetch = 0 : i64, scratch_operands = 0 : i64, tpu.core_type = #tpu.core_type<tc>, window_params = [{transform_indices = @transform_0, window_bounds = array<i64: 1, 16, 128>}, {transform_indices = @transform_1, window_bounds = array<i64: 1, 16, 128>}, {transform_indices = @transform_2, window_bounds = array<i64: 1, 1, 24, 128>}]} {
    %c0_i32 = arith.constant 0 : i32
    %0 = arith.cmpi eq, %arg2, %c0_i32 : i32
    %1 = arith.extui %0 : i1 to i32
    %c0_i32_0 = arith.constant 0 : i32
    %2 = arith.cmpi ne, %1, %c0_i32_0 : i32
    scf.if %2 {
      %cst_62 = arith.constant 0.000000e+00 : f32
      %89 = vector.broadcast %cst_62 : f32 to vector<24x128xf32>
      %c0_63 = arith.constant 0 : index
      %c0_64 = arith.constant 0 : index
      %c0_65 = arith.constant 0 : index
      %c0_66 = arith.constant 0 : index
      %90 = vector.load %arg5[%c0_63, %c0_64, %c0_65, %c0_66] : memref<1x1x24x128xf32, #tpu.memory_space<vmem>>, vector<1x1x24x128xf32>
      %91 = vector.shape_cast %90 : vector<1x1x24x128xf32> to vector<24x128xf32>
      %92 = vector.shape_cast %89 : vector<24x128xf32> to vector<1x1x24x128xf32>
      tpu.vector_store %arg5[%c0_63, %c0_64, %c0_65, %c0_66], %92 {strides = array<i32>} : memref<1x1x24x128xf32, #tpu.memory_space<vmem>>, vector<1x1x24x128xf32>,
    } else {
    }
    %cst = arith.constant 0.000000e+00 : f32
    %c0_i32_1 = arith.constant 0 : i32
    %c8_i32 = arith.constant 8 : i32
    %3 = arith.muli %c0_i32_1, %c8_i32 : i32
    %4 = tpu.assume_multiple %3, 8 : i32
    %c0 = arith.constant 0 : index
    %5 = arith.index_cast %4 : i32 to index
    %c0_2 = arith.constant 0 : index
    %6 = vector.load %arg3[%c0, %5, %c0_2] : memref<1x16x128xf32, #tpu.memory_space<vmem>>, vector<1x8x128xf32>
    %7 = vector.shape_cast %6 : vector<1x8x128xf32> to vector<8x128xf32>
    %c0_3 = arith.constant 0 : index
    %8 = arith.index_cast %4 : i32 to index
    %c0_4 = arith.constant 0 : index
    %9 = vector.load %arg4[%c0_3, %8, %c0_4] : memref<1x16x128xf32, #tpu.memory_space<vmem>>, vector<1x8x128xf32>
    %10 = vector.shape_cast %9 : vector<1x8x128xf32> to vector<8x128xf32>
    %cst_5 = arith.constant 0.000000e+00 : f32
    %11 = vector.broadcast %cst_5 : f32 to vector<8x128xf32>
    %12 = arith.maximumf %7, %11 : vector<8x128xf32>
    %13 = arith.mulf %7, %10 : vector<8x128xf32>
    %14 = arith.subf %12, %13 : vector<8x128xf32>
    %15 = math.absf %7 : vector<8x128xf32>
    %cst_6 = arith.constant 0.000000e+00 : f32
    %16 = vector.broadcast %cst_6 : f32 to vector<8x128xf32>
    %17 = arith.subf %16, %15 : vector<8x128xf32>
    %18 = math.exp %17 : vector<8x128xf32>
    %19 = math.log1p %18 : vector<8x128xf32>
    %20 = arith.addf %14, %19 : vector<8x128xf32>
    %21 = vector.broadcast %cst : f32 to vector<8x128xf32>
    %22 = arith.cmpf ogt, %7, %21 : vector<8x128xf32>
    %23 = arith.extui %22 : vector<8x128xi1> to vector<8x128xi32>
    %24 = arith.sitofp %23 : vector<8x128xi32> to vector<8x128xf32>
    %cst_7 = arith.constant 0.000000e+00 : f32
    %25 = vector.broadcast %cst_7 : f32 to vector<8x128xf32>
    %26 = arith.select %22, %10, %25 : vector<8x128xi1>, vector<8x128xf32>
    %c0_8 = arith.constant 0 : index
    %c0_9 = arith.constant 0 : index
    %c0_10 = arith.constant 0 : index
    %c0_11 = arith.constant 0 : index
    %27 = vector.load %arg5[%c0_8, %c0_9, %c0_10, %c0_11] : memref<1x1x24x128xf32, #tpu.memory_space<vmem>>, vector<1x1x8x128xf32>
    %28 = vector.shape_cast %27 : vector<1x1x8x128xf32> to vector<8x128xf32>
    %29 = arith.addf %28, %20 : vector<8x128xf32>
    %c0_12 = arith.constant 0 : index
    %c0_13 = arith.constant 0 : index
    %c0_14 = arith.constant 0 : index
    %c0_15 = arith.constant 0 : index
    %30 = vector.load %arg5[%c0_12, %c0_13, %c0_14, %c0_15] : memref<1x1x24x128xf32, #tpu.memory_space<vmem>>, vector<1x1x8x128xf32>
    %31 = vector.shape_cast %30 : vector<1x1x8x128xf32> to vector<8x128xf32>
    %32 = vector.shape_cast %29 : vector<8x128xf32> to vector<1x1x8x128xf32>
    tpu.vector_store %arg5[%c0_12, %c0_13, %c0_14, %c0_15], %32 {strides = array<i32>} : memref<1x1x24x128xf32, #tpu.memory_space<vmem>>, vector<1x1x8x128xf32>,
    %c0_16 = arith.constant 0 : index
    %c0_17 = arith.constant 0 : index
    %c8 = arith.constant 8 : index
    %c0_18 = arith.constant 0 : index
    %33 = vector.load %arg5[%c0_16, %c0_17, %c8, %c0_18] : memref<1x1x24x128xf32, #tpu.memory_space<vmem>>, vector<1x1x8x128xf32>
    %34 = vector.shape_cast %33 : vector<1x1x8x128xf32> to vector<8x128xf32>
    %35 = arith.addf %34, %26 : vector<8x128xf32>
    %c0_19 = arith.constant 0 : index
    %c0_20 = arith.constant 0 : index
    %c8_21 = arith.constant 8 : index
    %c0_22 = arith.constant 0 : index
    %36 = vector.load %arg5[%c0_19, %c0_20, %c8_21, %c0_22] : memref<1x1x24x128xf32, #tpu.memory_space<vmem>>, vector<1x1x8x128xf32>
    %37 = vector.shape_cast %36 : vector<1x1x8x128xf32> to vector<8x128xf32>
    %38 = vector.shape_cast %35 : vector<8x128xf32> to vector<1x1x8x128xf32>
    tpu.vector_store %arg5[%c0_19, %c0_20, %c8_21, %c0_22], %38 {strides = array<i32>} : memref<1x1x24x128xf32, #tpu.memory_space<vmem>>, vector<1x1x8x128xf32>,
    %c0_23 = arith.constant 0 : index
    %c0_24 = arith.constant 0 : index
    %c16 = arith.constant 16 : index
    %c0_25 = arith.constant 0 : index
    %39 = vector.load %arg5[%c0_23, %c0_24, %c16, %c0_25] : memref<1x1x24x128xf32, #tpu.memory_space<vmem>>, vector<1x1x8x128xf32>
    %40 = vector.shape_cast %39 : vector<1x1x8x128xf32> to vector<8x128xf32>
    %41 = arith.addf %10, %24 : vector<8x128xf32>
    %42 = arith.addf %40, %41 : vector<8x128xf32>
    %c0_26 = arith.constant 0 : index
    %c0_27 = arith.constant 0 : index
    %c16_28 = arith.constant 16 : index
    %c0_29 = arith.constant 0 : index
    %43 = vector.load %arg5[%c0_26, %c0_27, %c16_28, %c0_29] : memref<1x1x24x128xf32, #tpu.memory_space<vmem>>, vector<1x1x8x128xf32>
    %44 = vector.shape_cast %43 : vector<1x1x8x128xf32> to vector<8x128xf32>
    %45 = vector.shape_cast %42 : vector<8x128xf32> to vector<1x1x8x128xf32>
    tpu.vector_store %arg5[%c0_26, %c0_27, %c16_28, %c0_29], %45 {strides = array<i32>} : memref<1x1x24x128xf32, #tpu.memory_space<vmem>>, vector<1x1x8x128xf32>,
    %c1_i32 = arith.constant 1 : i32
    %c8_i32_30 = arith.constant 8 : i32
    %46 = arith.muli %c1_i32, %c8_i32_30 : i32
    %47 = tpu.assume_multiple %46, 8 : i32
    %c0_31 = arith.constant 0 : index
    %48 = arith.index_cast %47 : i32 to index
    %c0_32 = arith.constant 0 : index
    %49 = vector.load %arg3[%c0_31, %48, %c0_32] : memref<1x16x128xf32, #tpu.memory_space<vmem>>, vector<1x8x128xf32>
    %50 = vector.shape_cast %49 : vector<1x8x128xf32> to vector<8x128xf32>
    %c0_33 = arith.constant 0 : index
    %51 = arith.index_cast %47 : i32 to index
    %c0_34 = arith.constant 0 : index
    %52 = vector.load %arg4[%c0_33, %51, %c0_34] : memref<1x16x128xf32, #tpu.memory_space<vmem>>, vector<1x8x128xf32>
    %53 = vector.shape_cast %52 : vector<1x8x128xf32> to vector<8x128xf32>
    %cst_35 = arith.constant 0.000000e+00 : f32
    %54 = vector.broadcast %cst_35 : f32 to vector<8x128xf32>
    %55 = arith.maximumf %50, %54 : vector<8x128xf32>
    %56 = arith.mulf %50, %53 : vector<8x128xf32>
    %57 = arith.subf %55, %56 : vector<8x128xf32>
    %58 = math.absf %50 : vector<8x128xf32>
    %cst_36 = arith.constant 0.000000e+00 : f32
    %59 = vector.broadcast %cst_36 : f32 to vector<8x128xf32>
    %60 = arith.subf %59, %58 : vector<8x128xf32>
    %61 = math.exp %60 : vector<8x128xf32>
    %62 = math.log1p %61 : vector<8x128xf32>
    %63 = arith.addf %57, %62 : vector<8x128xf32>
    %64 = vector.broadcast %cst : f32 to vector<8x128xf32>
    %65 = arith.cmpf ogt, %50, %64 : vector<8x128xf32>
    %66 = arith.extui %65 : vector<8x128xi1> to vector<8x128xi32>
    %67 = arith.sitofp %66 : vector<8x128xi32> to vector<8x128xf32>
    %cst_37 = arith.constant 0.000000e+00 : f32
    %68 = vector.broadcast %cst_37 : f32 to vector<8x128xf32>
    %69 = arith.select %65, %53, %68 : vector<8x128xi1>, vector<8x128xf32>
    %c0_38 = arith.constant 0 : index
    %c0_39 = arith.constant 0 : index
    %c0_40 = arith.constant 0 : index
    %c0_41 = arith.constant 0 : index
    %70 = vector.load %arg5[%c0_38, %c0_39, %c0_40, %c0_41] : memref<1x1x24x128xf32, #tpu.memory_space<vmem>>, vector<1x1x8x128xf32>
    %71 = vector.shape_cast %70 : vector<1x1x8x128xf32> to vector<8x128xf32>
    %72 = arith.addf %71, %63 : vector<8x128xf32>
    %c0_42 = arith.constant 0 : index
    %c0_43 = arith.constant 0 : index
    %c0_44 = arith.constant 0 : index
    %c0_45 = arith.constant 0 : index
    %73 = vector.load %arg5[%c0_42, %c0_43, %c0_44, %c0_45] : memref<1x1x24x128xf32, #tpu.memory_space<vmem>>, vector<1x1x8x128xf32>
    %74 = vector.shape_cast %73 : vector<1x1x8x128xf32> to vector<8x128xf32>
    %75 = vector.shape_cast %72 : vector<8x128xf32> to vector<1x1x8x128xf32>
    tpu.vector_store %arg5[%c0_42, %c0_43, %c0_44, %c0_45], %75 {strides = array<i32>} : memref<1x1x24x128xf32, #tpu.memory_space<vmem>>, vector<1x1x8x128xf32>,
    %c0_46 = arith.constant 0 : index
    %c0_47 = arith.constant 0 : index
    %c8_48 = arith.constant 8 : index
    %c0_49 = arith.constant 0 : index
    %76 = vector.load %arg5[%c0_46, %c0_47, %c8_48, %c0_49] : memref<1x1x24x128xf32, #tpu.memory_space<vmem>>, vector<1x1x8x128xf32>
    %77 = vector.shape_cast %76 : vector<1x1x8x128xf32> to vector<8x128xf32>
    %78 = arith.addf %77, %69 : vector<8x128xf32>
    %c0_50 = arith.constant 0 : index
    %c0_51 = arith.constant 0 : index
    %c8_52 = arith.constant 8 : index
    %c0_53 = arith.constant 0 : index
    %79 = vector.load %arg5[%c0_50, %c0_51, %c8_52, %c0_53] : memref<1x1x24x128xf32, #tpu.memory_space<vmem>>, vector<1x1x8x128xf32>
    %80 = vector.shape_cast %79 : vector<1x1x8x128xf32> to vector<8x128xf32>
    %81 = vector.shape_cast %78 : vector<8x128xf32> to vector<1x1x8x128xf32>
    tpu.vector_store %arg5[%c0_50, %c0_51, %c8_52, %c0_53], %81 {strides = array<i32>} : memref<1x1x24x128xf32, #tpu.memory_space<vmem>>, vector<1x1x8x128xf32>,
    %c0_54 = arith.constant 0 : index
    %c0_55 = arith.constant 0 : index
    %c16_56 = arith.constant 16 : index
    %c0_57 = arith.constant 0 : index
    %82 = vector.load %arg5[%c0_54, %c0_55, %c16_56, %c0_57] : memref<1x1x24x128xf32, #tpu.memory_space<vmem>>, vector<1x1x8x128xf32>
    %83 = vector.shape_cast %82 : vector<1x1x8x128xf32> to vector<8x128xf32>
    %84 = arith.addf %53, %67 : vector<8x128xf32>
    %85 = arith.addf %83, %84 : vector<8x128xf32>
    %c0_58 = arith.constant 0 : index
    %c0_59 = arith.constant 0 : index
    %c16_60 = arith.constant 16 : index
    %c0_61 = arith.constant 0 : index
    %86 = vector.load %arg5[%c0_58, %c0_59, %c16_60, %c0_61] : memref<1x1x24x128xf32, #tpu.memory_space<vmem>>, vector<1x1x8x128xf32>
    %87 = vector.shape_cast %86 : vector<1x1x8x128xf32> to vector<8x128xf32>
    %88 = vector.shape_cast %85 : vector<8x128xf32> to vector<1x1x8x128xf32>
    tpu.vector_store %arg5[%c0_58, %c0_59, %c16_60, %c0_61], %88 {strides = array<i32>} : memref<1x1x24x128xf32, #tpu.memory_space<vmem>>, vector<1x1x8x128xf32>,
    %c2_i32 = arith.constant 2 : i32
    return
  }
  func.func @transform_0(%arg0: i32, %arg1: i32, %arg2: i32) -> (i32, i32, i32) {
    %c1_i32 = arith.constant 1 : i32
    %0 = arith.muli %arg1, %c1_i32 : i32
    %1 = arith.addi %0, %arg2 : i32
    %c0_i32 = arith.constant 0 : i32
    %c0_i32_0 = arith.constant 0 : i32
    return %arg0, %1, %c0_i32 : i32, i32, i32
  }
  func.func @transform_1(%arg0: i32, %arg1: i32, %arg2: i32) -> (i32, i32, i32) {
    %c1_i32 = arith.constant 1 : i32
    %0 = arith.muli %arg1, %c1_i32 : i32
    %1 = arith.addi %0, %arg2 : i32
    %c0_i32 = arith.constant 0 : i32
    %c0_i32_0 = arith.constant 0 : i32
    return %arg0, %1, %c0_i32 : i32, i32, i32
  }
  func.func @transform_2(%arg0: i32, %arg1: i32, %arg2: i32) -> (i32, i32, i32, i32) {
    %c0_i32 = arith.constant 0 : i32
    %c0_i32_0 = arith.constant 0 : i32
    %c0_i32_1 = arith.constant 0 : i32
    return %arg0, %arg1, %c0_i32, %c0_i32_0 : i32, i32, i32, i32
  }
}

</mosaic_0001>

<llo_original>
// kernel: tpu_custom_call.1
$region0: #{tpu_custom_call.1}
  #allocation0 [shape = 'u32[]', space=smem, size = 0x4, offset = 0x4, fixed_abs, tag = 'smem constant byte address 0x4 - core index']
  #allocation1 [shape = 'u32[72,128]{1,0:T(1,128)}', space=vmem, size = 0x9000, scoped, tag = 'internal scratch']
  %s0 = inlined_call_operand.hbm [shape: f32[2,16,128], index: 0, kind: input, shape index: {}]
  %s1 = inlined_call_operand.hbm [shape: f32[2,16,128], index: 1, kind: input, shape index: {}]
  %s2 = inlined_call_operand.hbm [shape: f32[2,1,24,128], index: 2, kind: output, shape index: {}]
  %s3 = sld [smem:[#allocation0]]
  $region53: #{tpu_custom_call.1} parent=0
    _
  %s5 = ssub.s32 1, %s3
  %s6 = scalar_select 0, %s5, %s3
  $region1: #{tpu_custom_call.1} parent=0
    #allocation2 [shape = 'u8[16384]{0}', space=vmem, size = 0x4000, scoped, tag = 'input window, operand 0']
    #allocation3 [shape = 's32[2]{0}', space=sflag, size = 0x8, scoped, tag = 'scoped memory for tpu_custom_call.1']
    #allocation4 [shape = 's32[2]{0}', space=sflag, size = 0x8, scoped, tag = 'scoped memory for tpu_custom_call.1']
    #allocation5 [shape = 'u8[16384]{0}', space=vmem, size = 0x4000, scoped, tag = 'input window, operand 1']
    #allocation6 [shape = 's32[2]{0}', space=sflag, size = 0x8, scoped, tag = 'scoped memory for tpu_custom_call.1']
    #allocation7 [shape = 'u8[24576]{0}', space=vmem, size = 0x6000, scoped, tag = 'output window, operand 0']
    %7 = vsyncpa [#allocation3], 0
    %s8 = scalar_lea.sflag [#allocation3], 1
    %9 = vsyncpa %s8, 0
    %10 = vsyncpa [#allocation6], 0
    %s11 = scalar_lea.sflag [#allocation6], 1
    %12 = vsyncpa %s11, 0
    %13 = vsyncpa [#allocation4], 0
    %s14 = scalar_lea.sflag [#allocation4], 1
    %15 = vsyncpa %s14, 0
    loop: start=0, step=1, limit=4
    $region2: #{tpu_custom_call.1} parent=1 // loop_pre_header
      _
    $region3: #{tpu_custom_call.1} parent=1 // loop_header
      %s17 = sphi 0, %s21
      %p18 = scmp.ge.s32.totalorder %s17, 4
      %s24 = sphi 0, %s43
      %s25 = sphi 0, %s39
      %s26 = sphi 0, %s35
      %s27 = sphi 0, %s24
      %s28 = sphi 0, %s25
      %s29 = sphi 0, %s26
      %s30 = sphi 0, %s27
      %s31 = sphi 0, %s28
      %s32 = sphi 0, %s29
      %s50 = sphi 0, %s52
      %s53 = sphi 0, %s50
      %s54 = sphi 0, %s53
      %s70 = sphi 0, %s54
      %s80 = sphi 0, %s82
      %s83 = sphi 0, %s80
      %s84 = sphi 0, %s83
      %s100 = sphi 0, %s84
      %s108 = sphi 0, %s110
      %s111 = sphi 0, %s108
      %s112 = sphi 0, %s111
      %s128 = sphi 0, %s112
    $region4: #{tpu_custom_call.1} parent=1 // loop_header_branch
      %20 = sbr.rel (%p18) target = $region8
    $region5: #{tpu_custom_call.1} parent=1 // loop_body
      %s22 = ssub.s32 %s17, 1
      %s23 = ssub.s32 %s17, 2
      %s33 = sadd.s32 1, %s26
      %p34 = scmp.ge.s32.totalorder %s33, 1
      %s35 = scalar_select %p34, 0, %s33
      %s36 = sadd.s32 1, %s25
      %s37 = scalar_select %p34, %s36, %s25
      %p38 = scmp.ge.s32.totalorder %s37, 1
      %s39 = scalar_select %p38, 0, %s37
      %s40 = sadd.s32 1, %s24
      %s41 = scalar_select %p38, %s40, %s24
      %p42 = scmp.ge.s32.totalorder %s41, 2
      %s43 = scalar_select %p42, 0, %s41
      %s44 = sadd.s32 %s25, %s26
      %s45 = sadd.s32 %s39, %s35
      %s46 = ssub.s32 %s24, %s43
      %s47 = ssub.s32 %s44, %s45
      %s48 = sor.u32 %s46, %s47
      %p49 = scmp.eq.s32.totalorder %s48, 0
      %s51 = sadd.s32 %s50, 1
      %s52 = scalar_select %p49, %s50, %s51
      %p55 = pneg %p49
      %p56 = scmp.eq.s32.totalorder %s17, 1
      %p57 = por %p55, %p56
      %p58 = scmp.ne.s32.totalorder %s50, %s53
      %p59 = scmp.eq.s32.totalorder %s17, 0
      %p60 = por %p58, %p59
      %p61 = scmp.ne.s32.totalorder %s50, %s53
      %p62 = scmp.eq.s32.totalorder %s22, 1
      %p63 = por %p61, %p62
      %p64 = scmp.ne.s32.totalorder %s53, %s54
      %p65 = scmp.eq.s32.totalorder %s22, 0
      %p66 = por %p64, %p65
      %p67 = scmp.ne.s32.totalorder %s53, %s54
      %p68 = scmp.eq.s32.totalorder %s23, 1
      %p69 = por %p67, %p68
      %p71 = scmp.ne.s32.totalorder %s54, %s70
      %p72 = scmp.eq.s32.totalorder %s23, 0
      %p73 = por %p71, %p72
      %s74 = sadd.s32 %s25, %s26
      %s75 = sadd.s32 %s39, %s35
      %s76 = ssub.s32 %s24, %s43
      %s77 = ssub.s32 %s74, %s75
      %s78 = sor.u32 %s76, %s77
      %p79 = scmp.eq.s32.totalorder %s78, 0
      %s81 = sadd.s32 %s80, 1
      %s82 = scalar_select %p79, %s80, %s81
      %p85 = pneg %p79
      %p86 = scmp.eq.s32.totalorder %s17, 1
      %p87 = por %p85, %p86
      %p88 = scmp.ne.s32.totalorder %s80, %s83
      %p89 = scmp.eq.s32.totalorder %s17, 0
      %p90 = por %p88, %p89
      %p91 = scmp.ne.s32.totalorder %s80, %s83
      %p92 = scmp.eq.s32.totalorder %s22, 1
      %p93 = por %p91, %p92
      %p94 = scmp.ne.s32.totalorder %s83, %s84
      %p95 = scmp.eq.s32.totalorder %s22, 0
      %p96 = por %p94, %p95
      %p97 = scmp.ne.s32.totalorder %s83, %s84
      %p98 = scmp.eq.s32.totalorder %s23, 1
      %p99 = por %p97, %p98
      %p101 = scmp.ne.s32.totalorder %s84, %s100
      %p102 = scmp.eq.s32.totalorder %s23, 0
      %p103 = por %p101, %p102
      %s104 = ssub.s32 %s24, %s43
      %s105 = ssub.s32 %s25, %s39
      %s106 = sor.u32 %s104, %s105
      %p107 = scmp.eq.s32.totalorder %s106, 0
      %s109 = sadd.s32 %s108, 1
      %s110 = scalar_select %p107, %s108, %s109
      %p113 = pneg %p107
      %p114 = scmp.eq.s32.totalorder %s17, 1
      %p115 = por %p113, %p114
      %p116 = scmp.ne.s32.totalorder %s108, %s111
      %p117 = scmp.eq.s32.totalorder %s17, 0
      %p118 = por %p116, %p117
      %p119 = scmp.ne.s32.totalorder %s108, %s111
      %p120 = scmp.eq.s32.totalorder %s22, 1
      %p121 = por %p119, %p120
      %p122 = scmp.ne.s32.totalorder %s111, %s112
      %p123 = scmp.eq.s32.totalorder %s22, 0
      %p124 = por %p122, %p123
      %p125 = scmp.ne.s32.totalorder %s111, %s112
      %p126 = scmp.eq.s32.totalorder %s23, 1
      %p127 = por %p125, %p126
      %p129 = scmp.ne.s32.totalorder %s112, %s128
      %p130 = scmp.eq.s32.totalorder %s23, 0
      %p131 = por %p129, %p130
      %p132 = scmp.le.s32.totalorder 1, %s17
      %p133 = scmp.lt.s32.totalorder %s17, 3
      %p134 = pnand %p132, %p133
      %p135 = pneg %p134
      // Predicated region
      $region9: #{tpu_custom_call.1} parent=5 // pred_check
        _
      $region10: #{tpu_custom_call.1} parent=5 // pred_check_branch
        %137 = sbr.rel (%p134) target = $region12
      $region11: #{tpu_custom_call.1} parent=5 // pred_region
        %s138 = ssub.s32 %s17, 1
      $region12: #{tpu_custom_call.1} parent=5 // pred_fallthru
        _
      %p139 = scmp.lt.s32.totalorder %s17, 2
      // Predicated region
      $region13: #{tpu_custom_call.1} parent=5 // pred_check
        %p140 = pneg %p139
      $region14: #{tpu_custom_call.1} parent=5 // pred_check_branch
        %142 = sbr.rel (%p140) target = $region16
      $region15: #{tpu_custom_call.1} parent=5 // pred_region
        // Predicated region
        $region17: #{tpu_custom_call.1} parent=15 // pred_check
          %p143 = pneg %p60
        $region18: #{tpu_custom_call.1} parent=15 // pred_check_branch
          %145 = sbr.rel (%p143) target = $region20
        $region19: #{tpu_custom_call.1} parent=15 // pred_region
          %s146 = sand.u32 %s50, 1
          %s147 = scalar_lea.sflag [#allocation3], %s146
          %s148 = sand.u32 %s50, 1
          %s149 = smul.addr %s148, 16
          %s150 = scalar_lea.vmem [#allocation2], %s149
          %s151 = sadd.s32 %s25, %s26
          %s152 = smul.u32 2, %s151
          %154 = vsyncadd %s147, 0
          %s155 = smul.addr %s24, 2
          %s156 = sadd.s32 %s152, %s155
          %s157 = smul.addr %s156, 8
          %s158 = scalar_lea.hbm %s0, %s157
          %s159 = sshll.u32 %s158, 4
          %s160 = int_to_ptr.hbm [resolvable:$true] %s159
          %s161 = sshll.u32 %s150, 4
          %s162 = int_to_ptr.vmem [resolvable:$true] %s161
          %167 = dma.hbm_to_vmem [thread:$0]  %s160, 256, %s162, %s147, 128, 128, 8
        $region20: #{tpu_custom_call.1} parent=15 // pred_fallthru
          _
        // Predicated region
        $region21: #{tpu_custom_call.1} parent=15 // pred_check
          %p168 = pneg %p90
        $region22: #{tpu_custom_call.1} parent=15 // pred_check_branch
          %170 = sbr.rel (%p168) target = $region24
        $region23: #{tpu_custom_call.1} parent=15 // pred_region
          %s171 = sand.u32 %s80, 1
          %s172 = scalar_lea.sflag [#allocation6], %s171
          %s173 = sand.u32 %s80, 1
          %s174 = smul.addr %s173, 16
          %s175 = scalar_lea.vmem [#allocation5], %s174
          %s176 = sadd.s32 %s25, %s26
          %s177 = smul.u32 2, %s176
          %179 = vsyncadd %s172, 0
          %s180 = smul.addr %s24, 2
          %s181 = sadd.s32 %s177, %s180
          %s182 = smul.addr %s181, 8
          %s183 = scalar_lea.hbm %s1, %s182
          %s184 = sshll.u32 %s183, 4
          %s185 = int_to_ptr.hbm [resolvable:$true] %s184
          %s186 = sshll.u32 %s175, 4
          %s187 = int_to_ptr.vmem [resolvable:$true] %s186
          %192 = dma.hbm_to_vmem [thread:$0]  %s185, 256, %s187, %s172, 128, 128, 8
        $region24: #{tpu_custom_call.1} parent=15 // pred_fallthru
          _
      $region16: #{tpu_custom_call.1} parent=5 // pred_fallthru
        _
      %p193 = scmp.le.s32.totalorder 1, %s17
      %p194 = scmp.lt.s32.totalorder %s17, 3
      %p195 = pnand %p193, %p194
      %p196 = pneg %p195
      // Predicated region
      $region25: #{tpu_custom_call.1} parent=5 // pred_check
        _
      $region26: #{tpu_custom_call.1} parent=5 // pred_check_branch
        %198 = sbr.rel (%p195) target = $region28
      $region27: #{tpu_custom_call.1} parent=5 // pred_region
        %s199 = ssub.s32 %s17, 1
        %s200 = sand.u32 %s53, 1
        %s201 = scalar_lea.sflag [#allocation3], %s200
        %s202 = sand.u32 %s53, 1
        %s203 = smul.addr %s202, 16
        %s204 = scalar_lea.vmem [#allocation2], %s203
        // Predicated region
        $region29: #{tpu_custom_call.1} parent=27 // pred_check
          %p205 = pneg %p66
        $region30: #{tpu_custom_call.1} parent=27 // pred_check_branch
          %207 = sbr.rel (%p205) target = $region32
        $region31: #{tpu_custom_call.1} parent=27 // pred_region
          %209 = dma.done %s201, 256
        $region32: #{tpu_custom_call.1} parent=27 // pred_fallthru
          _
        %s210 = sand.u32 %s83, 1
        %s211 = scalar_lea.sflag [#allocation6], %s210
        %s212 = sand.u32 %s83, 1
        %s213 = smul.addr %s212, 16
        %s214 = scalar_lea.vmem [#allocation5], %s213
        // Predicated region
        $region33: #{tpu_custom_call.1} parent=27 // pred_check
          %p215 = pneg %p96
        $region34: #{tpu_custom_call.1} parent=27 // pred_check_branch
          %217 = sbr.rel (%p215) target = $region36
        $region35: #{tpu_custom_call.1} parent=27 // pred_region
          %219 = dma.done %s211, 256
        $region36: #{tpu_custom_call.1} parent=27 // pred_fallthru
          _
        %s220 = sand.u32 %s53, 1
        %s221 = scalar_lea.sflag [#allocation3], %s220
        %s222 = sand.u32 %s53, 1
        %s223 = smul.addr %s222, 16
        %s224 = scalar_lea.vmem [#allocation2], %s223
        %p225 = pneg %p66
        %p226 = pneg %p63
        %s227 = sand.u32 %s83, 1
        %s228 = scalar_lea.sflag [#allocation6], %s227
        %s229 = sand.u32 %s83, 1
        %s230 = smul.addr %s229, 16
        %s231 = scalar_lea.vmem [#allocation5], %s230
        %p232 = pneg %p96
        %p233 = pneg %p93
        %p234 = pneg %p124
        %p235 = pneg %p121
        %s236 = sand.u32 %s111, 1
        %s237 = scalar_lea.sflag [#allocation4], %s236
        %s238 = sand.u32 %s111, 1
        %s239 = smul.addr %s238, 24
        %s240 = scalar_lea.vmem [#allocation7], %s239
        %s241 = sadd.s32 %s28, %s29
        %s242 = smul.u32 2, %s241
        %s243 = sadd.s32 %s28, %s29
        %s244 = smul.u32 2, %s243
        %p245 = scmp.eq.s32.totalorder %s29, 0
        // Predicated region
        $region37: #{tpu_custom_call.1} parent=27 // pred_check
          %p246 = pneg %p245
        $region38: #{tpu_custom_call.1} parent=27 // pred_check_branch
          %248 = sbr.rel (%p246) target = $region40
        $region39: #{tpu_custom_call.1} parent=27 // pred_region
          %249 = vst [vmem:[%s240] sm:$0xff] 0.0
          %250 = vst [vmem:[%s240 + $0x8] sm:$0xff] 0.0
          %251 = vst [vmem:[%s240 + $0x10] sm:$0xff] 0.0
        $region40: #{tpu_custom_call.1} parent=27 // pred_fallthru
          _
        %v252 = vld [vmem:[%s204] sm:$0xff]
        %v253 = vld [vmem:[%s214] sm:$0xff]
        %v254 = vmax.f32 %v252, 0.0
        %v255 = vmul.f32 %v252, %v253
        %v256 = vsub.f32 %v254, %v255
        %v257 = vand.u32 2147483647, %v252
        %v258 = vsub.f32 0.0, %v257
        %v259 = vmul.f32 %v258, 1.442695
        %v260 = vpow.pop %v259
        %v261 = vadd.f32 %v260, 1.0
        %v262 = vlog2.pop %v261
        %v263 = vmul.f32 %v262, 0.6931472
        %v264 = vmul.f32 -0.5, %v260
        %v265 = vadd.f32 %v264, 1.0
        %v266 = vmul.f32 %v265, %v260
        %v267 = vand.u32 2147483647, %v260
        %vm268 = vcmp.lt.f32.partialorder %v267, 0.0004427343
        %v269 = vsel %vm268, %v266, %v263
        %v270 = vadd.f32 %v256, %v269
        %vm271 = vcmp.gt.f32.partialorder %v252, 0.0
        %v272 = vsel %vm271, 1, 0
        %v273 = vcvt.s32.f32 %v272
        %v274 = vsel %vm271, %v253, 0.0
        %v275 = vld [vmem:[%s240] sm:$0xff]
        %v276 = vadd.f32 %v275, %v270
        %277 = vst [vmem:[%s240] sm:$0xff] %v276
        %v278 = vld [vmem:[%s240 + $0x8] sm:$0xff]
        %v279 = vadd.f32 %v278, %v274
        %280 = vst [vmem:[%s240 + $0x8] sm:$0xff] %v279
        %v281 = vld [vmem:[%s240 + $0x10] sm:$0xff]
        %v282 = vadd.f32 %v253, %v273
        %v283 = vadd.f32 %v281, %v282
        %284 = vst [vmem:[%s240 + $0x10] sm:$0xff] %v283
        %s285 = scalar_lea.vmem %s204, 8 [#allocation2]
        %v286 = vld [vmem:[%s285] sm:$0xff]
        %s287 = scalar_lea.vmem %s214, 8 [#allocation5]
        %v288 = vld [vmem:[%s287] sm:$0xff]
        %v289 = vmax.f32 %v286, 0.0
        %v290 = vmul.f32 %v286, %v288
        %v291 = vsub.f32 %v289, %v290
        %v292 = vand.u32 2147483647, %v286
        %v293 = vsub.f32 0.0, %v292
        %v294 = vmul.f32 %v293, 1.442695
        %v295 = vpow.pop %v294
        %v296 = vadd.f32 %v295, 1.0
        %v297 = vlog2.pop %v296
        %v298 = vmul.f32 %v297, 0.6931472
        %v299 = vmul.f32 -0.5, %v295
        %v300 = vadd.f32 %v299, 1.0
        %v301 = vmul.f32 %v300, %v295
        %v302 = vand.u32 2147483647, %v295
        %vm303 = vcmp.lt.f32.partialorder %v302, 0.0004427343
        %v304 = vsel %vm303, %v301, %v298
        %v305 = vadd.f32 %v291, %v304
        %vm306 = vcmp.gt.f32.partialorder %v286, 0.0
        %v307 = vsel %vm306, 1, 0
        %v308 = vcvt.s32.f32 %v307
        %v309 = vsel %vm306, %v288, 0.0
        %v310 = vld [vmem:[%s240] sm:$0xff]
        %v311 = vadd.f32 %v310, %v305
        %312 = vst [vmem:[%s240] sm:$0xff] %v311
        %v313 = vld [vmem:[%s240 + $0x8] sm:$0xff]
        %v314 = vadd.f32 %v313, %v309
        %315 = vst [vmem:[%s240 + $0x8] sm:$0xff] %v314
        %v316 = vld [vmem:[%s240 + $0x10] sm:$0xff]
        %v317 = vadd.f32 %v288, %v308
        %v318 = vadd.f32 %v316, %v317
        %319 = vst [vmem:[%s240 + $0x10] sm:$0xff] %v318
        %s320 = sand.u32 %s111, 1
        %s321 = scalar_lea.sflag [#allocation4], %s320
        %s322 = sand.u32 %s111, 1
        %s323 = smul.addr %s322, 24
        %s324 = scalar_lea.vmem [#allocation7], %s323
        // Predicated region
        $region41: #{tpu_custom_call.1} parent=27 // pred_check
          %p325 = pneg %p121
        $region42: #{tpu_custom_call.1} parent=27 // pred_check_branch
          %327 = sbr.rel (%p325) target = $region44
        $region43: #{tpu_custom_call.1} parent=27 // pred_region
          %329 = vsyncadd %s321, 0
          %s330 = smul.addr %s28, 3
          %s331 = smul.addr %s27, 3
          %s332 = sadd.s32 %s330, %s331
          %s333 = smul.addr %s332, 8
          %s334 = scalar_lea.hbm %s2, %s333
          %s335 = sshll.u32 %s324, 4
          %s336 = int_to_ptr.vmem [resolvable:$true] %s335
          %s337 = sshll.u32 %s334, 4
          %s338 = int_to_ptr.hbm [resolvable:$true] %s337
          %343 = dma.vmem_to_hbm [thread:$0]  %s336, 384, %s338, %s321, 128, 128, 8
        $region44: #{tpu_custom_call.1} parent=27 // pred_fallthru
          _
      $region28: #{tpu_custom_call.1} parent=5 // pred_fallthru
        _
      %p344 = scmp.le.s32.totalorder 2, %s17
      // Predicated region
      $region45: #{tpu_custom_call.1} parent=5 // pred_check
        %p345 = pneg %p344
      $region46: #{tpu_custom_call.1} parent=5 // pred_check_branch
        %347 = sbr.rel (%p345) target = $region48
      $region47: #{tpu_custom_call.1} parent=5 // pred_region
        %s348 = ssub.s32 %s17, 2
        // Predicated region
        $region49: #{tpu_custom_call.1} parent=47 // pred_check
          %p349 = pneg %p127
        $region50: #{tpu_custom_call.1} parent=47 // pred_check_branch
          %351 = sbr.rel (%p349) target = $region52
        $region51: #{tpu_custom_call.1} parent=47 // pred_region
          %s352 = sand.u32 %s112, 1
          %s353 = scalar_lea.sflag [#allocation4], %s352
          %s354 = sand.u32 %s112, 1
          %s355 = smul.addr %s354, 24
          %s356 = scalar_lea.vmem [#allocation7], %s355
          %358 = dma.done %s353, 384
        $region52: #{tpu_custom_call.1} parent=47 // pred_fallthru
          _
      $region48: #{tpu_custom_call.1} parent=5 // pred_fallthru
        _
    $region6: #{tpu_custom_call.1} parent=1 // loop_footer
      %s21 = sadd.s32 1, %s17
    $region7: #{tpu_custom_call.1} parent=1 // loop_footer_branch
      %16 = sbr.rel target = $region3
    $region8: #{tpu_custom_call.1} parent=1 // loop_exit
      _
    %359 = vsyncpa [#allocation3], 1
    %s360 = scalar_lea.sflag [#allocation3], 1
    %361 = vsyncpa %s360, 1
    %362 = vsyncpa [#allocation6], 1
    %s363 = scalar_lea.sflag [#allocation6], 1
    %364 = vsyncpa %s363, 1
    %365 = vsyncpa [#allocation4], 1
    %s366 = scalar_lea.sflag [#allocation4], 1
    %367 = vsyncpa %s366, 1

</llo_original>
